<compile_context>
chip_gen: v6e
topology: v6e:2x2x1
jax: 0.10.0
libtpu: 0.0.40
codegen_flags: <defaults>
</compile_context>

<pallas_src>
import functools

import jax
import jax.numpy as jnp
from jax import lax
from jax.experimental import pallas as pl
from jax.experimental.pallas import tpu as pltpu


NEG_FILL = -1e9        # sigmoid(NEG_FILL) underflows to 0 in f32 (padding only)
PAD_SENTINEL = -1.0    # padded candidate product; strictly below any real product >= 0


def _round_up(x, m):
    return ((x + m - 1) // m) * m


def _row_block(n):
    """Sublane-aligned row-block size and padded row count for a small (n, lanes) tensor."""
    bn = min(_round_up(n, 8), 64)
    return bn, _round_up(n, bn)


# --------------------------------------------------------------------------- #
# Kernel 1: fused sigmoid of the three per-pair class-logit tensors.          #
# Mirrors the three `.sigmoid_()` calls of the module.                        #
# --------------------------------------------------------------------------- #
def _sigmoid3_kernel(s_ref, p_ref, o_ref, ss_ref, ps_ref, os_ref):
    ss_ref[...] = jax.nn.sigmoid(s_ref[...])
    ps_ref[...] = jax.nn.sigmoid(p_ref[...])
    os_ref[...] = jax.nn.sigmoid(o_ref[...])


def sigmoid_factors(s_logits, p_logits, o_logits):
    """Lane-dense fused sigmoid.  Padded logits are NEG_FILL -> padded probs ~ 0;
    the padded region is sliced off before any top-K so it never matters."""
    N, S = s_logits.shape
    _, P = p_logits.shape
    _, O = o_logits.shape
    S_pad, P_pad, O_pad = (_round_up(d, 128) for d in (S, P, O))
    bn, N_pad = _row_block(N)

    def pad(x, cols):
        x = x.astype(jnp.float32)
        return jnp.pad(x, ((0, N_pad - x.shape[0]), (0, cols - x.shape[1])),
                       constant_values=NEG_FILL)

    in_specs = [pl.BlockSpec((bn, S_pad), lambda i: (i, 0)),
                pl.BlockSpec((bn, P_pad), lambda i: (i, 0)),
                pl.BlockSpec((bn, O_pad), lambda i: (i, 0))]
    out_specs = [pl.BlockSpec((bn, S_pad), lambda i: (i, 0)),
                 pl.BlockSpec((bn, P_pad), lambda i: (i, 0)),
                 pl.BlockSpec((bn, O_pad), lambda i: (i, 0))]

    return pl.pallas_call(
        _sigmoid3_kernel,
        out_shape=(jax.ShapeDtypeStruct((N_pad, S_pad), jnp.float32),
                   jax.ShapeDtypeStruct((N_pad, P_pad), jnp.float32),
                   jax.ShapeDtypeStruct((N_pad, O_pad), jnp.float32)),
        grid_spec=pltpu.PrefetchScalarGridSpec(
            num_scalar_prefetch=0,
            grid=(N_pad // bn,),
            in_specs=in_specs,
            out_specs=out_specs),
        compiler_params=pltpu.CompilerParams(
            dimension_semantics=("parallel",)),
    )(pad(s_logits, S_pad), pad(p_logits, P_pad), pad(o_logits, O_pad))


# --------------------------------------------------------------------------- #
# Kernel 2: rank-pruned triplet_matmul.                                       #
# out[n, c] = sa[n, c] * pb[n, c] * oc[n, c] over the static candidate set.   #
# --------------------------------------------------------------------------- #
def _pruned_triplet_kernel(sa_ref, pb_ref, oc_ref, out_ref):
    out_ref[...] = sa_ref[...] * pb_ref[...] * oc_ref[...]


def pruned_triplet_products(sa, pb, oc):
    N, C = sa.shape
    C_pad = _round_up(C, 128)
    bn, N_pad = _row_block(N)

    def pad(x, fill):
        return jnp.pad(x.astype(jnp.float32),
                       ((0, N_pad - N), (0, C_pad - C)), constant_values=fill)

    spec = pl.BlockSpec((bn, C_pad), lambda i: (i, 0))
    prod = pl.pallas_call(
        _pruned_triplet_kernel,
        out_shape=jax.ShapeDtypeStruct((N_pad, C_pad), jnp.float32),
        grid_spec=pltpu.PrefetchScalarGridSpec(
            num_scalar_prefetch=0,
            grid=(N_pad // bn,),
            in_specs=[spec, spec, spec],
            out_specs=spec),
        compiler_params=pltpu.CompilerParams(
            dimension_semantics=("parallel",)),
    )(pad(sa, PAD_SENTINEL), pad(pb, 1.0), pad(oc, 1.0))
    return prod, C_pad


def _rank_triples(K, Ka, Kb, Kc):
    """All 0-indexed rank triples (i, j, l) with (i+1)*(j+1)*(l+1) <= K.
    Any element of the rank-1 product tensor that is in a top-K satisfies this,
    so restricting to these candidates is lossless (value-set exact, ties aside)."""
    tri = []
    for i in range(min(Ka, K)):
        for j in range(min(Kb, K // (i + 1))):
            for l in range(min(Kc, K // ((i + 1) * (j + 1)))):
                tri.append((i, j, l))
    return tri


@functools.partial(jax.jit, static_argnames=("Ks",))
def predet_topk_relationships(s_logits, p_logits, o_logits, Ks=(25, 50, 100)):
    """Hot path of Model.forward for one image:
    sigmoid -> (pruned) triplet products -> top-K -> nonzero-ordered (n,s,p,o) tuples.

    Returns (rels, factor_probs_padded) where rels[k] = (n, s, p, o) index arrays
    for Ks[k], sorted in ascending (n, s, p, o) flat order — matching
    `spomasks.nonzero(as_tuple=True)` in the original module.
    """
    N, S = s_logits.shape
    _, P = p_logits.shape
    _, O = o_logits.shape
    K_top = max(Ks)

    # Stage 1 (Pallas): fused sigmoid.
    s_prob_pad, p_prob_pad, o_prob_pad = sigmoid_factors(s_logits, p_logits, o_logits)
    s_prob = s_prob_pad[:N, :S]
    p_prob = p_prob_pad[:N, :P]
    o_prob = o_prob_pad[:N, :O]

    # Stage 2 (JAX, tiny): per-factor, per-pair top-k.
    Ka, Kb, Kc = min(K_top, S), min(K_top, P), min(K_top, O)
    sv, si = lax.top_k(s_prob, Ka)     # (N, Ka)
    pv, pj = lax.top_k(p_prob, Kb)     # (N, Kb)
    ov, olidx = lax.top_k(o_prob, Kc)  # (N, Kc)

    # Stage 3: static rank-triple candidate enumeration + gathers (tiny).
    tri = _rank_triples(K_top, Ka, Kb, Kc)
    C = len(tri)
    ci = jnp.asarray([t[0] for t in tri], jnp.int32)
    cj = jnp.asarray([t[1] for t in tri], jnp.int32)
    cl = jnp.asarray([t[2] for t in tri], jnp.int32)

    sa = jnp.take(sv, ci, axis=1)        # (N, C) candidate factor values
    pb = jnp.take(pv, cj, axis=1)
    oc = jnp.take(ov, cl, axis=1)
    s_id = jnp.take(si, ci, axis=1)      # (N, C) original class indices
    p_id = jnp.take(pj, cj, axis=1)
    o_id = jnp.take(olidx, cl, axis=1)

    # Stage 4 (Pallas): pruned triplet products; padded slots are -1.0.
    prod_pad, C_pad = pruned_triplet_products(sa, pb, oc)

    # Stage 5 (JAX): one global top-K over all candidates; prefixes give smaller Ks.
    total_valid = N * S * P * O
    K_use = min(K_top, total_valid, N * C)
    _, idxs = lax.top_k(prod_pad.reshape(-1), K_use)
    n_idx, c_idx = jnp.divmod(idxs, C_pad)       # selected slots are always real
    s_cat = s_id[n_idx, c_idx]
    p_cat = p_id[n_idx, c_idx]
    o_cat = o_id[n_idx, c_idx]

    rels = []
    for K in Ks:
        kk = min(K, K_use)
        n_k, s_k, p_k, o_k = n_idx[:kk], s_cat[:kk], p_cat[:kk], o_cat[:kk]
        # Ascending (n, s, p, o) flat order, mirroring nonzero(as_tuple=True).
        order = jnp.argsort(((n_k * S + s_k) * P + p_k) * O + o_k)
        rels.append((n_k[order], s_k[order], p_k[order], o_k[order]))
    return tuple(rels), (s_prob_pad, p_prob_pad, o_prob_pad)


if __name__ == "__main__":
    key = jax.random.PRNGKey(0)
    # Small stand-in shapes: N candidate subject/object pairs (real code: top=150),
    # S = O = NUM_OBJ_CLASSES, P = NUM_PRED_CLASSES.
    N, S, P, O = 6, 20, 10, 24
    k1, k2, k3 = jax.random.split(key, 3)
    s_logits = jax.random.normal(k1, (N, S), jnp.float32)
    p_logits = jax.random.normal(k2, (N, P), jnp.float32)
    o_logits = jax.random.normal(k3, (N, O), jnp.float32)

    Ks = (25, 50, 100)
    rels, (s_prob_pad, p_prob_pad, o_prob_pad) = predet_topk_relationships(
        s_logits, p_logits, o_logits, Ks=Ks)
    rels = jax.tree_util.tree_map(lambda x: jax.block_until_ready(x), rels)
    s_prob_pad = jax.block_until_ready(s_prob_pad)

    # --- correctness gates (pure-JAX references) ------------------------------
    sig_s = jax.nn.sigmoid(s_logits)
    sig_p = jax.nn.sigmoid(p_logits)
    sig_o = jax.nn.sigmoid(o_logits)

    # Kernel 1: fused sigmoid matches, padded region ~0 (sliced off downstream anyway).
    assert jnp.allclose(s_prob_pad[:N, :S], sig_s, atol=1e-6), "sigmoid kernel mismatch (s)"
    assert jnp.allclose(p_prob_pad[:N, :P], sig_p, atol=1e-6), "sigmoid kernel mismatch (p)"
    assert jnp.allclose(o_prob_pad[:N, :O], sig_o, atol=1e-6), "sigmoid kernel mismatch (o)"
    pad_only = s_prob_pad.at[:N, :S].set(0.0)
    assert float(jnp.max(jnp.abs(pad_only))) < 1e-30, "padding not (near-)zero"

    # Full pipeline vs. brute-force reference cube (only built here, at toy sizes).
    ref = (sig_s[:, :, None, None] * sig_p[:, None, :, None] * sig_o[:, None, None, :])
    for K, rel in zip(Ks, rels):
        K_eff = min(K, N * S * P * O)
        n_i, s_i, p_i, o_i = rel
        assert int(n_i.shape[0]) == K_eff
        # Indices must all be inside the valid ranges (never a padded slot).
        assert int(jnp.min(n_i)) >= 0 and int(jnp.max(n_i)) < N
        assert int(jnp.min(s_i)) >= 0 and int(jnp.max(s_i)) < S
        assert int(jnp.min(p_i)) >= 0 and int(jnp.max(p_i)) < P
        assert int(jnp.min(o_i)) >= 0 and int(jnp.max(o_i)) < O
        # Ascending (n,s,p,o) flat order + distinct tuples, mirroring nonzero().
        flat_key = ((n_i * S + s_i) * P + p_i) * O + o_i
        assert bool(jnp.all(flat_key[1:] > flat_key[:-1])), "not nonzero()-ordered"
        # Selected probabilities match the reference top-K value set.
        got_vals = ref[n_i, s_i, p_i, o_i]
        ref_vals, _ = lax.top_k(ref.reshape(-1), K_eff)
        assert jnp.allclose(jnp.sort(got_vals), jnp.sort(ref_vals), atol=1e-6), \
            "top-K value-set mismatch"

    print("KERNEL_OK")
</pallas_src>

<mosaic_0001>
module attributes {stable_mosaic.version = 11 : i64} {
  func.func @_sigmoid3_kernel(%arg0: i32, %arg1: memref<8x128xf32, #tpu.memory_space<vmem>>, %arg2: memref<8x128xf32, #tpu.memory_space<vmem>>, %arg3: memref<8x128xf32, #tpu.memory_space<vmem>>, %arg4: memref<8x128xf32, #tpu.memory_space<vmem>>, %arg5: memref<8x128xf32, #tpu.memory_space<vmem>>, %arg6: memref<8x128xf32, #tpu.memory_space<vmem>>) attributes {dimension_semantics = [#tpu.dimension_semantics<parallel>], iteration_bounds = array<i64: 1>, scalar_prefetch = 0 : i64, scratch_operands = 0 : i64, tpu.core_type = #tpu.core_type<tc>, window_params = [{transform_indices = @transform_0, window_bounds = array<i64: 8, 128>}, {transform_indices = @transform_1, window_bounds = array<i64: 8, 128>}, {transform_indices = @transform_2, window_bounds = array<i64: 8, 128>}, {transform_indices = @transform_3, window_bounds = array<i64: 8, 128>}, {transform_indices = @transform_4, window_bounds = array<i64: 8, 128>}, {transform_indices = @transform_5, window_bounds = array<i64: 8, 128>}]} {
    %c0 = arith.constant 0 : index
    %c0_0 = arith.constant 0 : index
    %0 = vector.load %arg1[%c0, %c0_0] : memref<8x128xf32, #tpu.memory_space<vmem>>, vector<8x128xf32>
    %1 = arith.negf %0 : vector<8x128xf32>
    %2 = math.exp %1 : vector<8x128xf32>
    %cst = arith.constant 1.000000e+00 : f32
    %3 = vector.broadcast %cst : f32 to vector<8x128xf32>
    %4 = arith.addf %3, %2 : vector<8x128xf32>
    %5 = arith.divf %3, %4 : vector<8x128xf32>
    %c0_1 = arith.constant 0 : index
    %c0_2 = arith.constant 0 : index
    %6 = vector.load %arg4[%c0_1, %c0_2] : memref<8x128xf32, #tpu.memory_space<vmem>>, vector<8x128xf32>
    tpu.vector_store %arg4[%c0_1, %c0_2], %5 {strides = array<i32>} : memref<8x128xf32, #tpu.memory_space<vmem>>, vector<8x128xf32>,
    %c0_3 = arith.constant 0 : index
    %c0_4 = arith.constant 0 : index
    %7 = vector.load %arg2[%c0_3, %c0_4] : memref<8x128xf32, #tpu.memory_space<vmem>>, vector<8x128xf32>
    %8 = arith.negf %7 : vector<8x128xf32>
    %9 = math.exp %8 : vector<8x128xf32>
    %cst_5 = arith.constant 1.000000e+00 : f32
    %10 = vector.broadcast %cst_5 : f32 to vector<8x128xf32>
    %11 = arith.addf %10, %9 : vector<8x128xf32>
    %12 = arith.divf %10, %11 : vector<8x128xf32>
    %c0_6 = arith.constant 0 : index
    %c0_7 = arith.constant 0 : index
    %13 = vector.load %arg5[%c0_6, %c0_7] : memref<8x128xf32, #tpu.memory_space<vmem>>, vector<8x128xf32>
    tpu.vector_store %arg5[%c0_6, %c0_7], %12 {strides = array<i32>} : memref<8x128xf32, #tpu.memory_space<vmem>>, vector<8x128xf32>,
    %c0_8 = arith.constant 0 : index
    %c0_9 = arith.constant 0 : index
    %14 = vector.load %arg3[%c0_8, %c0_9] : memref<8x128xf32, #tpu.memory_space<vmem>>, vector<8x128xf32>
    %15 = arith.negf %14 : vector<8x128xf32>
    %16 = math.exp %15 : vector<8x128xf32>
    %cst_10 = arith.constant 1.000000e+00 : f32
    %17 = vector.broadcast %cst_10 : f32 to vector<8x128xf32>
    %18 = arith.addf %17, %16 : vector<8x128xf32>
    %19 = arith.divf %17, %18 : vector<8x128xf32>
    %c0_11 = arith.constant 0 : index
    %c0_12 = arith.constant 0 : index
    %20 = vector.load %arg6[%c0_11, %c0_12] : memref<8x128xf32, #tpu.memory_space<vmem>>, vector<8x128xf32>
    tpu.vector_store %arg6[%c0_11, %c0_12], %19 {strides = array<i32>} : memref<8x128xf32, #tpu.memory_space<vmem>>, vector<8x128xf32>,
    return
  }
  func.func @transform_0(%arg0: i32) -> (i32, i32) {
    %c0_i32 = arith.constant 0 : i32
    %c0_i32_0 = arith.constant 0 : i32
    return %arg0, %c0_i32 : i32, i32
  }
  func.func @transform_1(%arg0: i32) -> (i32, i32) {
    %c0_i32 = arith.constant 0 : i32
    %c0_i32_0 = arith.constant 0 : i32
    return %arg0, %c0_i32 : i32, i32
  }
  func.func @transform_2(%arg0: i32) -> (i32, i32) {
    %c0_i32 = arith.constant 0 : i32
    %c0_i32_0 = arith.constant 0 : i32
    return %arg0, %c0_i32 : i32, i32
  }
  func.func @transform_3(%arg0: i32) -> (i32, i32) {
    %c0_i32 = arith.constant 0 : i32
    %c0_i32_0 = arith.constant 0 : i32
    return %arg0, %c0_i32 : i32, i32
  }
  func.func @transform_4(%arg0: i32) -> (i32, i32) {
    %c0_i32 = arith.constant 0 : i32
    %c0_i32_0 = arith.constant 0 : i32
    return %arg0, %c0_i32 : i32, i32
  }
  func.func @transform_5(%arg0: i32) -> (i32, i32) {
    %c0_i32 = arith.constant 0 : i32
    %c0_i32_0 = arith.constant 0 : i32
    return %arg0, %c0_i32 : i32, i32
  }
}

module attributes {stable_mosaic.version = 11 : i64} {
  func.func @_pruned_triplet_kernel(%arg0: i32, %arg1: memref<8x896xf32, #tpu.memory_space<vmem>>, %arg2: memref<8x896xf32, #tpu.memory_space<vmem>>, %arg3: memref<8x896xf32, #tpu.memory_space<vmem>>, %arg4: memref<8x896xf32, #tpu.memory_space<vmem>>) attributes {dimension_semantics = [#tpu.dimension_semantics<parallel>], iteration_bounds = array<i64: 1>, scalar_prefetch = 0 : i64, scratch_operands = 0 : i64, tpu.core_type = #tpu.core_type<tc>, window_params = [{transform_indices = @transform_0, window_bounds = array<i64: 8, 896>}, {transform_indices = @transform_1, window_bounds = array<i64: 8, 896>}, {transform_indices = @transform_2, window_bounds = array<i64: 8, 896>}, {transform_indices = @transform_3, window_bounds = array<i64: 8, 896>}]} {
    %c0 = arith.constant 0 : index
    %c0_0 = arith.constant 0 : index
    %0 = vector.load %arg1[%c0, %c0_0] : memref<8x896xf32, #tpu.memory_space<vmem>>, vector<8x896xf32>
    %c0_1 = arith.constant 0 : index
    %c0_2 = arith.constant 0 : index
    %1 = vector.load %arg2[%c0_1, %c0_2] : memref<8x896xf32, #tpu.memory_space<vmem>>, vector<8x896xf32>
    %2 = arith.mulf %0, %1 : vector<8x896xf32>
    %c0_3 = arith.constant 0 : index
    %c0_4 = arith.constant 0 : index
    %3 = vector.load %arg3[%c0_3, %c0_4] : memref<8x896xf32, #tpu.memory_space<vmem>>, vector<8x896xf32>
    %4 = arith.mulf %2, %3 : vector<8x896xf32>
    %c0_5 = arith.constant 0 : index
    %c0_6 = arith.constant 0 : index
    %5 = vector.load %arg4[%c0_5, %c0_6] : memref<8x896xf32, #tpu.memory_space<vmem>>, vector<8x896xf32>
    tpu.vector_store %arg4[%c0_5, %c0_6], %4 {strides = array<i32>} : memref<8x896xf32, #tpu.memory_space<vmem>>, vector<8x896xf32>,
    return
  }
  func.func @transform_0(%arg0: i32) -> (i32, i32) {
    %c0_i32 = arith.constant 0 : i32
    %c0_i32_0 = arith.constant 0 : i32
    return %arg0, %c0_i32 : i32, i32
  }
  func.func @transform_1(%arg0: i32) -> (i32, i32) {
    %c0_i32 = arith.constant 0 : i32
    %c0_i32_0 = arith.constant 0 : i32
    return %arg0, %c0_i32 : i32, i32
  }
  func.func @transform_2(%arg0: i32) -> (i32, i32) {
    %c0_i32 = arith.constant 0 : i32
    %c0_i32_0 = arith.constant 0 : i32
    return %arg0, %c0_i32 : i32, i32
  }
  func.func @transform_3(%arg0: i32) -> (i32, i32) {
    %c0_i32 = arith.constant 0 : i32
    %c0_i32_0 = arith.constant 0 : i32
    return %arg0, %c0_i32 : i32, i32
  }
}

</mosaic_0001>

<llo_original>
// kernel: predet_topk_relationships.2
$region0: #{predet_topk_relationships.2}
  #allocation0 [shape = 'u32[]', space=smem, size = 0x4, offset = 0x4, fixed_abs, tag = 'smem constant byte address 0x4 - core index']
  #allocation1 [shape = 'u32[144,128]{1,0:T(1,128)}', space=vmem, size = 0x12000, scoped, tag = 'internal scratch']
  %s0 = inlined_call_operand.vmem [shape: f32[8,128], index: 0, kind: input, shape index: {}]
  %s1 = inlined_call_operand.vmem [shape: f32[8,128], index: 1, kind: input, shape index: {}]
  %s2 = inlined_call_operand.vmem [shape: f32[8,128], index: 2, kind: input, shape index: {}]
  %s3 = inlined_call_operand.vmem [shape: f32[8,128], index: 3, kind: output, shape index: {0}]
  %s4 = inlined_call_operand.vmem [shape: f32[8,128], index: 4, kind: output, shape index: {1}]
  %s5 = inlined_call_operand.vmem [shape: f32[8,128], index: 5, kind: output, shape index: {2}]
  %6 = xla_tuple %s3, %s4, %s5
  %s7 = sld [smem:[#allocation0]]
  $region38: #{predet_topk_relationships.2} parent=0
    _
  %s9 = ssub.s32 1, %s7
  %s10 = scalar_select 0, %s9, %s7
  // Predicated region
  $region2: #{predet_topk_relationships.2} parent=0 // pred_check
    _
  $region3: #{predet_topk_relationships.2} parent=0 // pred_check_branch
    %12 = sbr.rel (0) target = $region5
  $region4: #{predet_topk_relationships.2} parent=0 // pred_region
    _
  $region5: #{predet_topk_relationships.2} parent=0 // pred_fallthru
    _
  // Predicated region
  $region6: #{predet_topk_relationships.2} parent=0 // pred_check
    _
  $region7: #{predet_topk_relationships.2} parent=0 // pred_check_branch
    %14 = sbr.rel (0) target = $region9
  $region8: #{predet_topk_relationships.2} parent=0 // pred_region
    _
  $region9: #{predet_topk_relationships.2} parent=0 // pred_fallthru
    _
  // Predicated region
  $region10: #{predet_topk_relationships.2} parent=0 // pred_check
    _
  $region11: #{predet_topk_relationships.2} parent=0 // pred_check_branch
    %16 = sbr.rel (0) target = $region13
  $region12: #{predet_topk_relationships.2} parent=0 // pred_region
    _
  $region13: #{predet_topk_relationships.2} parent=0 // pred_fallthru
    _
  %v17 = vld [vmem:[%s0] sm:$0xff]
  %v18 = vxor.u32 %v17, 2147483648
  %v19 = vmul.f32 %v18, 1.442695
  %v20 = vpow.pop %v19
  %v21 = vadd.f32 %v20, 1.0
  %v22 = vrcp.pop %v21
  %v23 = vmul.f32 1.0, %v22
  %24 = vst [vmem:[%s3] sm:$0xff] %v23
  %v25 = vld [vmem:[%s1] sm:$0xff]
  %v26 = vxor.u32 %v25, 2147483648
  %v27 = vmul.f32 %v26, 1.442695
  %v28 = vpow.pop %v27
  %v29 = vadd.f32 %v28, 1.0
  %v30 = vrcp.pop %v29
  %v31 = vmul.f32 1.0, %v30
  %32 = vst [vmem:[%s4] sm:$0xff] %v31
  %v33 = vld [vmem:[%s2] sm:$0xff]
  %v34 = vxor.u32 %v33, 2147483648
  %v35 = vmul.f32 %v34, 1.442695
  %v36 = vpow.pop %v35
  %v37 = vadd.f32 %v36, 1.0
  %v38 = vrcp.pop %v37
  %v39 = vmul.f32 1.0, %v38
  %40 = vst [vmem:[%s5] sm:$0xff] %v39
  // Predicated region
  $region14: #{predet_topk_relationships.2} parent=0 // pred_check
    _
  $region15: #{predet_topk_relationships.2} parent=0 // pred_check_branch
    %42 = sbr.rel (0) target = $region17
  $region16: #{predet_topk_relationships.2} parent=0 // pred_region
    _
  $region17: #{predet_topk_relationships.2} parent=0 // pred_fallthru
    _
  // Predicated region
  $region18: #{predet_topk_relationships.2} parent=0 // pred_check
    _
  $region19: #{predet_topk_relationships.2} parent=0 // pred_check_branch
    %44 = sbr.rel (0) target = $region21
  $region20: #{predet_topk_relationships.2} parent=0 // pred_region
    _
  $region21: #{predet_topk_relationships.2} parent=0 // pred_fallthru
    _
  // Predicated region
  $region22: #{predet_topk_relationships.2} parent=0 // pred_check
    _
  $region23: #{predet_topk_relationships.2} parent=0 // pred_check_branch
    %46 = sbr.rel (0) target = $region25
  $region24: #{predet_topk_relationships.2} parent=0 // pred_region
    _
  $region25: #{predet_topk_relationships.2} parent=0 // pred_fallthru
    _
  // Predicated region
  $region26: #{predet_topk_relationships.2} parent=0 // pred_check
    _
  $region27: #{predet_topk_relationships.2} parent=0 // pred_check_branch
    %48 = sbr.rel (0) target = $region29
  $region28: #{predet_topk_relationships.2} parent=0 // pred_region
    _
  $region29: #{predet_topk_relationships.2} parent=0 // pred_fallthru
    _
  // Predicated region
  $region30: #{predet_topk_relationships.2} parent=0 // pred_check
    _
  $region31: #{predet_topk_relationships.2} parent=0 // pred_check_branch
    %50 = sbr.rel (0) target = $region33
  $region32: #{predet_topk_relationships.2} parent=0 // pred_region
    _
  $region33: #{predet_topk_relationships.2} parent=0 // pred_fallthru
    _
  // Predicated region
  $region34: #{predet_topk_relationships.2} parent=0 // pred_check
    _
  $region35: #{predet_topk_relationships.2} parent=0 // pred_check_branch
    %52 = sbr.rel (0) target = $region37
  $region36: #{predet_topk_relationships.2} parent=0 // pred_region
    _
  $region37: #{predet_topk_relationships.2} parent=0 // pred_fallthru
    _

// kernel: predet_topk_relationships.3
$region0: #{predet_topk_relationships.3}
  #allocation0 [shape = 'u32[]', space=smem, size = 0x4, offset = 0x4, fixed_abs, tag = 'smem constant byte address 0x4 - core index']
  #allocation1 [shape = 'u32[144,128]{1,0:T(1,128)}', space=vmem, size = 0x12000, scoped, tag = 'internal scratch']
  %s0 = inlined_call_operand.vmem [shape: f32[8,896], index: 0, kind: input, shape index: {}]
  %s1 = inlined_call_operand.vmem [shape: f32[8,896], index: 1, kind: input, shape index: {}]
  %s2 = inlined_call_operand.vmem [shape: f32[8,896], index: 2, kind: input, shape index: {}]
  %s3 = inlined_call_operand.vmem [shape: f32[8,896], index: 3, kind: output, shape index: {}]
  %s4 = sld [smem:[#allocation0]]
  $region22: #{predet_topk_relationships.3} parent=0
    _
  %s6 = ssub.s32 1, %s4
  %s7 = scalar_select 0, %s6, %s4
  // Predicated region
  $region2: #{predet_topk_relationships.3} parent=0 // pred_check
    _
  $region3: #{predet_topk_relationships.3} parent=0 // pred_check_branch
    %9 = sbr.rel (0) target = $region5
  $region4: #{predet_topk_relationships.3} parent=0 // pred_region
    _
  $region5: #{predet_topk_relationships.3} parent=0 // pred_fallthru
    _
  // Predicated region
  $region6: #{predet_topk_relationships.3} parent=0 // pred_check
    _
  $region7: #{predet_topk_relationships.3} parent=0 // pred_check_branch
    %11 = sbr.rel (0) target = $region9
  $region8: #{predet_topk_relationships.3} parent=0 // pred_region
    _
  $region9: #{predet_topk_relationships.3} parent=0 // pred_fallthru
    _
  // Predicated region
  $region10: #{predet_topk_relationships.3} parent=0 // pred_check
    _
  $region11: #{predet_topk_relationships.3} parent=0 // pred_check_branch
    %13 = sbr.rel (0) target = $region13
  $region12: #{predet_topk_relationships.3} parent=0 // pred_region
    _
  $region13: #{predet_topk_relationships.3} parent=0 // pred_fallthru
    _
  %v14 = vld [vmem:[%s0] sm:$0xff]
  %v15 = vld [vmem:[%s0 + $0x8] sm:$0xff]
  %v16 = vld [vmem:[%s0 + $0x10] sm:$0xff]
  %v17 = vld [vmem:[%s0 + $0x18] sm:$0xff]
  %v18 = vld [vmem:[%s0 + $0x20] sm:$0xff]
  %v19 = vld [vmem:[%s0 + $0x28] sm:$0xff]
  %v20 = vld [vmem:[%s0 + $0x30] sm:$0xff]
  %v21 = vld [vmem:[%s1] sm:$0xff]
  %v22 = vld [vmem:[%s1 + $0x8] sm:$0xff]
  %v23 = vld [vmem:[%s1 + $0x10] sm:$0xff]
  %v24 = vld [vmem:[%s1 + $0x18] sm:$0xff]
  %v25 = vld [vmem:[%s1 + $0x20] sm:$0xff]
  %v26 = vld [vmem:[%s1 + $0x28] sm:$0xff]
  %v27 = vld [vmem:[%s1 + $0x30] sm:$0xff]
  %v28 = vmul.f32 %v14, %v21
  %v29 = vmul.f32 %v15, %v22
  %v30 = vmul.f32 %v16, %v23
  %v31 = vmul.f32 %v17, %v24
  %v32 = vmul.f32 %v18, %v25
  %v33 = vmul.f32 %v19, %v26
  %v34 = vmul.f32 %v20, %v27
  %v35 = vld [vmem:[%s2] sm:$0xff]
  %v36 = vld [vmem:[%s2 + $0x8] sm:$0xff]
  %v37 = vld [vmem:[%s2 + $0x10] sm:$0xff]
  %v38 = vld [vmem:[%s2 + $0x18] sm:$0xff]
  %v39 = vld [vmem:[%s2 + $0x20] sm:$0xff]
  %v40 = vld [vmem:[%s2 + $0x28] sm:$0xff]
  %v41 = vld [vmem:[%s2 + $0x30] sm:$0xff]
  %v42 = vmul.f32 %v28, %v35
  %v43 = vmul.f32 %v29, %v36
  %v44 = vmul.f32 %v30, %v37
  %v45 = vmul.f32 %v31, %v38
  %v46 = vmul.f32 %v32, %v39
  %v47 = vmul.f32 %v33, %v40
  %v48 = vmul.f32 %v34, %v41
  %49 = vst [vmem:[%s3] sm:$0xff] %v42
  %50 = vst [vmem:[%s3 + $0x8] sm:$0xff] %v43
  %51 = vst [vmem:[%s3 + $0x10] sm:$0xff] %v44
  %52 = vst [vmem:[%s3 + $0x18] sm:$0xff] %v45
  %53 = vst [vmem:[%s3 + $0x20] sm:$0xff] %v46
  %54 = vst [vmem:[%s3 + $0x28] sm:$0xff] %v47
  %55 = vst [vmem:[%s3 + $0x30] sm:$0xff] %v48
  // Predicated region
  $region14: #{predet_topk_relationships.3} parent=0 // pred_check
    _
  $region15: #{predet_topk_relationships.3} parent=0 // pred_check_branch
    %57 = sbr.rel (0) target = $region17
  $region16: #{predet_topk_relationships.3} parent=0 // pred_region
    _
  $region17: #{predet_topk_relationships.3} parent=0 // pred_fallthru
    _
  // Predicated region
  $region18: #{predet_topk_relationships.3} parent=0 // pred_check
    _
  $region19: #{predet_topk_relationships.3} parent=0 // pred_check_branch
    %59 = sbr.rel (0) target = $region21
  $region20: #{predet_topk_relationships.3} parent=0 // pred_region
    _
  $region21: #{predet_topk_relationships.3} parent=0 // pred_fallthru
    _

</llo_original>
